<compile_context>
chip_gen: v6e
topology: v6e:2x2x1
jax: 0.10.0
libtpu: 0.0.40
codegen_flags: <defaults>
</compile_context>

<pallas_src>
import jax
import jax.numpy as jnp
from jax.experimental import pallas as pl
from jax.experimental.pallas import tpu as pltpu

HIDDEN = 256     # BERT hidden size implied by nn.Linear(256, 768)
OUT = 768        # fc_out output features
VOCAB = 128      # stand-in vocab (lane-width, so the in-kernel one-hot is lane-dense)
TYPE_VOCAB = 2
TYPE_PAD = VOCAB # token-type table zero-padded to VOCAB rows (shares the one-hot iota)
MAX_SEQ = 64


# ----------------------------------------------------------------------------
# Fused Pallas kernel: embedding gather+sum -> mean pool -> fc_out
# ----------------------------------------------------------------------------
def apacl_fused_kernel(ids_ref, tts_ref, word_ref, type_ref, pos_ref,
                       w_ref, b_ref, o_ref):
    # ids_ref/tts_ref : (TB, S)      int32   token / token-type ids (batch tile)
    # word_ref        : (VOCAB, H)   bf16    word-embedding table (stand-in Bertmodel)
    # type_ref        : (VOCAB, H)   bf16    token-type table, zero-padded rows >= 2
    # pos_ref         : (S, H)       f32     position embeddings for the first S positions
    # w_ref           : (H, OUT)     bf16    fc_out weight, stored (in, out)
    # b_ref           : (1, OUT)     f32     fc_out bias
    # o_ref           : (TB, OUT)    f32
    tb, s = ids_ref.shape
    inv_s = 1.0 / s                                            # static, folded scale

    # Build one-hot token counts over the (padded) vocab entirely in VMEM.
    vocab_iota = jax.lax.broadcasted_iota(jnp.int32, (tb, s, VOCAB), 2)
    onehot_w = (ids_ref[...][:, :, None] == vocab_iota).astype(jnp.float32)
    onehot_t = (tts_ref[...][:, :, None] == vocab_iota).astype(jnp.float32)
    counts_w = jnp.sum(onehot_w, axis=1).astype(jnp.bfloat16)  # (TB, VOCAB), exact ints
    counts_t = jnp.sum(onehot_t, axis=1).astype(jnp.bfloat16)  # (TB, VOCAB)

    # sum_s word_emb[ids] / type_emb[tts] as two small bf16 MXU matmuls, f32 accumulate.
    word_sum = jnp.dot(counts_w, word_ref[...], preferred_element_type=jnp.float32)
    type_sum = jnp.dot(counts_t, type_ref[...], preferred_element_type=jnp.float32)
    pos_sum = jnp.sum(pos_ref[...], axis=0, keepdims=True)     # (1, H) f32

    # mean over the sequence dim: sum * (1/S), kept in f32 (cheap VPU epilogue).
    pooled = (word_sum + type_sum + pos_sum) * inv_s           # (TB, H) f32

    # fc_out: bf16 MXU matmul with f32 accumulation; f32 bias add epilogue.
    proj = jnp.dot(pooled.astype(jnp.bfloat16), w_ref[...],
                   preferred_element_type=jnp.float32)         # (TB, OUT) f32
    o_ref[...] = proj + b_ref[...]


def apacl_head_fused(input_ids, token_type_ids, params, *, block_b=None):
    B, S = input_ids.shape
    H, O = params["fc_w"].shape
    if block_b is None:
        block_b = B if B <= 8 else 8
    # TODO(synk): pad the batch instead of asserting if B is not a multiple of block_b.
    assert B % block_b == 0, (B, block_b)
    grid = (B // block_b,)

    return pl.pallas_call(
        apacl_fused_kernel,
        out_shape=jax.ShapeDtypeStruct((B, O), jnp.float32),
        grid=grid,
        in_specs=[
            pl.BlockSpec((block_b, S), lambda i: (i, 0)),   # input_ids   (batch-tiled)
            pl.BlockSpec((block_b, S), lambda i: (i, 0)),   # token_type_ids
            pl.BlockSpec((VOCAB, H), lambda i: (0, 0)),     # word table (VMEM-resident)
            pl.BlockSpec((VOCAB, H), lambda i: (0, 0)),     # type table (VMEM-resident)
            pl.BlockSpec((S, H), lambda i: (0, 0)),         # pos_emb[:S]
            pl.BlockSpec((H, O), lambda i: (0, 0)),         # fc_w (bf16, VMEM-resident)
            pl.BlockSpec((1, O), lambda i: (0, 0)),         # fc_b
        ],
        out_specs=pl.BlockSpec((block_b, O), lambda i: (i, 0)),  # lane-dense: 768 = 6*128
        compiler_params=pltpu.CompilerParams(
            dimension_semantics=("parallel",)),             # batch tiles shard across TCs
    )(input_ids, token_type_ids, params["word_emb"], params["type_emb"],
      params["pos_emb"], params["fc_w"], params["fc_b"])


# ----------------------------------------------------------------------------
# Deterministic parameter init (synthetic; no checkpoint load)
# ----------------------------------------------------------------------------
def init_params(key):
    k_word, k_type, k_pos, k_w, k_b = jax.random.split(key, 5)
    type_rows = jax.random.normal(k_type, (TYPE_VOCAB, HIDDEN), jnp.float32) * 0.02
    type_emb = jnp.zeros((TYPE_PAD, HIDDEN), jnp.float32).at[:TYPE_VOCAB].set(type_rows)
    return {
        # embedding stand-in for the external Bertmodel (MXU operands stored bf16)
        "word_emb": (jax.random.normal(k_word, (VOCAB, HIDDEN), jnp.float32) * 0.02
                     ).astype(jnp.bfloat16),
        "type_emb": type_emb.astype(jnp.bfloat16),
        "pos_emb": jax.random.normal(k_pos, (MAX_SEQ, HIDDEN), jnp.float32) * 0.02,
        # fc_out: nn.Linear(256, 768), stored transposed (in, out), bf16
        "fc_w": (jax.random.normal(k_w, (HIDDEN, OUT), jnp.float32)
                 * (1.0 / jnp.sqrt(HIDDEN))).astype(jnp.bfloat16),
        "fc_b": jax.random.normal(k_b, (1, OUT), jnp.float32) * 0.01,
    }


# ----------------------------------------------------------------------------
# Forward pass mirroring ApaclModel.forward
# ----------------------------------------------------------------------------
def apacl_forward(params, src):
    # Reference uses .squeeze(); use an explicit axis so B==1 / S==1 don't get squeezed.
    input_ids = jnp.squeeze(src["input_ids"], axis=1).astype(jnp.int32)
    token_type_ids = jnp.squeeze(src["token_type_ids"], axis=1).astype(jnp.int32)
    # attention_mask is squeezed in the reference but never used by mean(dim=1); same here.
    return apacl_head_fused(input_ids, token_type_ids, params)


if __name__ == "__main__":
    key = jax.random.PRNGKey(0)
    k_params, k_ids, k_types = jax.random.split(key, 3)

    B, S = 2, 8
    params = init_params(k_params)

    src = {
        "input_ids": jax.random.randint(k_ids, (B, 1, S), 0, VOCAB, dtype=jnp.int32),
        "attention_mask": jnp.ones((B, 1, S), dtype=jnp.int32),
        "token_type_ids": jax.random.randint(k_types, (B, 1, S), 0, TYPE_VOCAB,
                                             dtype=jnp.int32),
    }

    out = jax.block_until_ready(apacl_forward(params, src))
    assert out.shape == (B, OUT), out.shape

    # plain-JAX reference of the same stand-in model (f32 math on the stored params)
    ids = jnp.squeeze(src["input_ids"], axis=1)
    tts = jnp.squeeze(src["token_type_ids"], axis=1)
    word = params["word_emb"].astype(jnp.float32)
    typ = params["type_emb"].astype(jnp.float32)
    hs = word[ids] + typ[tts] + params["pos_emb"][:S][None, :, :]     # (B, S, H)
    ref = hs.mean(axis=1) @ params["fc_w"].astype(jnp.float32) + params["fc_b"]
    assert jnp.allclose(out, ref, atol=2e-3, rtol=2e-3), \
        float(jnp.max(jnp.abs(out - ref)))

    print("KERNEL_OK")
</pallas_src>

<mosaic_0001>
module attributes {stable_mosaic.version = 11 : i64} {
  func.func @apacl_fused_kernel(%arg0: i32, %arg1: memref<2x8xi32, #tpu.memory_space<vmem>>, %arg2: memref<2x8xi32, #tpu.memory_space<vmem>>, %arg3: memref<128x256xbf16, #tpu.memory_space<vmem>>, %arg4: memref<128x256xbf16, #tpu.memory_space<vmem>>, %arg5: memref<8x256xf32, #tpu.memory_space<vmem>>, %arg6: memref<256x768xbf16, #tpu.memory_space<vmem>>, %arg7: memref<1x768xf32, #tpu.memory_space<vmem>>, %arg8: memref<2x768xf32, #tpu.memory_space<vmem>>) attributes {dimension_semantics = [#tpu.dimension_semantics<parallel>], iteration_bounds = array<i64: 1>, scalar_prefetch = 0 : i64, scratch_operands = 0 : i64, tpu.core_type = #tpu.core_type<tc>, window_params = [{transform_indices = @transform_0, window_bounds = array<i64: 2, 8>}, {transform_indices = @transform_1, window_bounds = array<i64: 2, 8>}, {pipeline_mode = #tpu.pipeline_mode<synchronous>, transform_indices = @transform_2, window_bounds = array<i64: 128, 256>}, {pipeline_mode = #tpu.pipeline_mode<synchronous>, transform_indices = @transform_3, window_bounds = array<i64: 128, 256>}, {transform_indices = @transform_4, window_bounds = array<i64: 8, 256>}, {pipeline_mode = #tpu.pipeline_mode<synchronous>, transform_indices = @transform_5, window_bounds = array<i64: 256, 768>}, {pipeline_mode = #tpu.pipeline_mode<synchronous>, transform_indices = @transform_6, window_bounds = array<i64: 1, 768>}, {transform_indices = @transform_7, window_bounds = array<i64: 2, 768>}]} {
    %0 = tpu.iota {dimensions = array<i32: 2>} : vector<2x8x128xi32>
    %c0 = arith.constant 0 : index
    %c0_0 = arith.constant 0 : index
    %1 = vector.load %arg1[%c0, %c0_0] : memref<2x8xi32, #tpu.memory_space<vmem>>, vector<2x8xi32>
    %2 = vector.shape_cast %1 : vector<2x8xi32> to vector<2x8x1xi32>
    %3 = vector.broadcast %2 : vector<2x8x1xi32> to vector<2x8x128xi32>
    %4 = arith.cmpi eq, %3, %0 : vector<2x8x128xi32>
    %5 = arith.extui %4 : vector<2x8x128xi1> to vector<2x8x128xi32>
    %6 = arith.sitofp %5 : vector<2x8x128xi32> to vector<2x8x128xf32>
    %c0_1 = arith.constant 0 : index
    %c0_2 = arith.constant 0 : index
    %7 = vector.load %arg2[%c0_1, %c0_2] : memref<2x8xi32, #tpu.memory_space<vmem>>, vector<2x8xi32>
    %8 = vector.shape_cast %7 : vector<2x8xi32> to vector<2x8x1xi32>
    %9 = vector.broadcast %8 : vector<2x8x1xi32> to vector<2x8x128xi32>
    %10 = arith.cmpi eq, %9, %0 : vector<2x8x128xi32>
    %11 = arith.extui %10 : vector<2x8x128xi1> to vector<2x8x128xi32>
    %12 = arith.sitofp %11 : vector<2x8x128xi32> to vector<2x8x128xf32>
    %cst = arith.constant dense<0.000000e+00> : vector<2x128xf32>
    %13 = vector.multi_reduction <add>, %6, %cst [1] : vector<2x8x128xf32> to vector<2x128xf32>
    %14 = arith.truncf %13 : vector<2x128xf32> to vector<2x128xbf16>
    %cst_3 = arith.constant dense<0.000000e+00> : vector<2x128xf32>
    %15 = vector.multi_reduction <add>, %12, %cst_3 [1] : vector<2x8x128xf32> to vector<2x128xf32>
    %16 = arith.truncf %15 : vector<2x128xf32> to vector<2x128xbf16>
    %c0_4 = arith.constant 0 : index
    %c0_5 = arith.constant 0 : index
    %17 = vector.load %arg3[%c0_4, %c0_5] : memref<128x256xbf16, #tpu.memory_space<vmem>>, vector<128x256xbf16>
    %cst_6 = arith.constant dense<0.000000e+00> : vector<2x256xf32>
    %18 = tpu.matmul %14, %17, %cst_6 {dimension_numbers = #tpu.dot_dimension_numbers<[1], [0], [0], [1], [0, 0, 1, 1], [], []>} : vector<2x128xbf16>, vector<128x256xbf16>, vector<2x256xf32> -> vector<2x256xf32>
    %c0_7 = arith.constant 0 : index
    %c0_8 = arith.constant 0 : index
    %19 = vector.load %arg4[%c0_7, %c0_8] : memref<128x256xbf16, #tpu.memory_space<vmem>>, vector<128x256xbf16>
    %cst_9 = arith.constant dense<0.000000e+00> : vector<2x256xf32>
    %20 = tpu.matmul %16, %19, %cst_9 {dimension_numbers = #tpu.dot_dimension_numbers<[1], [0], [0], [1], [0, 0, 1, 1], [], []>} : vector<2x128xbf16>, vector<128x256xbf16>, vector<2x256xf32> -> vector<2x256xf32>
    %c0_10 = arith.constant 0 : index
    %c0_11 = arith.constant 0 : index
    %21 = vector.load %arg5[%c0_10, %c0_11] : memref<8x256xf32, #tpu.memory_space<vmem>>, vector<8x256xf32>
    %cst_12 = arith.constant dense<0.000000e+00> : vector<256xf32>
    %22 = vector.multi_reduction <add>, %21, %cst_12 [0] : vector<8x256xf32> to vector<256xf32>
    %23 = vector.shape_cast %22 : vector<256xf32> to vector<1x256xf32>
    %24 = arith.addf %18, %20 : vector<2x256xf32>
    %25 = vector.broadcast %23 : vector<1x256xf32> to vector<2x256xf32>
    %26 = arith.addf %24, %25 : vector<2x256xf32>
    %cst_13 = arith.constant 1.250000e-01 : f32
    %27 = vector.broadcast %cst_13 : f32 to vector<2x256xf32>
    %28 = arith.mulf %26, %27 : vector<2x256xf32>
    %29 = arith.truncf %28 : vector<2x256xf32> to vector<2x256xbf16>
    %c0_14 = arith.constant 0 : index
    %c0_15 = arith.constant 0 : index
    %30 = vector.load %arg6[%c0_14, %c0_15] : memref<256x768xbf16, #tpu.memory_space<vmem>>, vector<256x768xbf16>
    %cst_16 = arith.constant dense<0.000000e+00> : vector<2x768xf32>
    %31 = tpu.matmul %29, %30, %cst_16 {dimension_numbers = #tpu.dot_dimension_numbers<[1], [0], [0], [1], [0, 0, 1, 1], [], []>} : vector<2x256xbf16>, vector<256x768xbf16>, vector<2x768xf32> -> vector<2x768xf32>
    %c0_17 = arith.constant 0 : index
    %c0_18 = arith.constant 0 : index
    %32 = vector.load %arg7[%c0_17, %c0_18] : memref<1x768xf32, #tpu.memory_space<vmem>>, vector<1x768xf32>
    %33 = vector.broadcast %32 : vector<1x768xf32> to vector<2x768xf32>
    %34 = arith.addf %31, %33 : vector<2x768xf32>
    %c0_19 = arith.constant 0 : index
    %c0_20 = arith.constant 0 : index
    %35 = vector.load %arg8[%c0_19, %c0_20] : memref<2x768xf32, #tpu.memory_space<vmem>>, vector<2x768xf32>
    tpu.vector_store %arg8[%c0_19, %c0_20], %34 {strides = array<i32>} : memref<2x768xf32, #tpu.memory_space<vmem>>, vector<2x768xf32>,
    return
  }
  func.func @transform_0(%arg0: i32) -> (i32, i32) {
    %c0_i32 = arith.constant 0 : i32
    %c0_i32_0 = arith.constant 0 : i32
    return %arg0, %c0_i32 : i32, i32
  }
  func.func @transform_1(%arg0: i32) -> (i32, i32) {
    %c0_i32 = arith.constant 0 : i32
    %c0_i32_0 = arith.constant 0 : i32
    return %arg0, %c0_i32 : i32, i32
  }
  func.func @transform_2(%arg0: i32) -> (i32, i32) {
    %c0_i32 = arith.constant 0 : i32
    %c0_i32_0 = arith.constant 0 : i32
    %c0_i32_1 = arith.constant 0 : i32
    return %c0_i32, %c0_i32_0 : i32, i32
  }
  func.func @transform_3(%arg0: i32) -> (i32, i32) {
    %c0_i32 = arith.constant 0 : i32
    %c0_i32_0 = arith.constant 0 : i32
    %c0_i32_1 = arith.constant 0 : i32
    return %c0_i32, %c0_i32_0 : i32, i32
  }
  func.func @transform_4(%arg0: i32) -> (i32, i32) {
    %c0_i32 = arith.constant 0 : i32
    %c0_i32_0 = arith.constant 0 : i32
    %c0_i32_1 = arith.constant 0 : i32
    return %c0_i32, %c0_i32_0 : i32, i32
  }
  func.func @transform_5(%arg0: i32) -> (i32, i32) {
    %c0_i32 = arith.constant 0 : i32
    %c0_i32_0 = arith.constant 0 : i32
    %c0_i32_1 = arith.constant 0 : i32
    return %c0_i32, %c0_i32_0 : i32, i32
  }
  func.func @transform_6(%arg0: i32) -> (i32, i32) {
    %c0_i32 = arith.constant 0 : i32
    %c0_i32_0 = arith.constant 0 : i32
    %c0_i32_1 = arith.constant 0 : i32
    return %c0_i32, %c0_i32_0 : i32, i32
  }
  func.func @transform_7(%arg0: i32) -> (i32, i32) {
    %c0_i32 = arith.constant 0 : i32
    %c0_i32_0 = arith.constant 0 : i32
    return %arg0, %c0_i32 : i32, i32
  }
}

</mosaic_0001>

<llo_original>
// kernel: tpu_custom_call.1
$region0: #{tpu_custom_call.1}
  #allocation0 [shape = 'u32[]', space=smem, size = 0x4, offset = 0x4, fixed_abs, tag = 'smem constant byte address 0x4 - core index']
  #allocation1 [shape = 'u32[144,128]{1,0:T(1,128)}', space=vmem, size = 0x12000, scoped, tag = 'internal scratch']
  %s0 = inlined_call_operand.hbm [shape: s32[2,8], index: 0, kind: input, shape index: {}]
  %s1 = inlined_call_operand.hbm [shape: s32[2,8], index: 1, kind: input, shape index: {}]
  %s2 = inlined_call_operand.hbm [shape: bf16[128,256], index: 2, kind: input, shape index: {}]
  %s3 = inlined_call_operand.hbm [shape: bf16[128,256], index: 3, kind: input, shape index: {}]
  %s4 = inlined_call_operand.hbm [shape: f32[64,256], index: 4, kind: input, shape index: {}]
  %s5 = inlined_call_operand.hbm [shape: bf16[256,768], index: 5, kind: input, shape index: {}]
  %s6 = inlined_call_operand.vmem [shape: f32[1,768], index: 6, kind: input, shape index: {}]
  %s7 = inlined_call_operand.hbm [shape: f32[2,768], index: 7, kind: output, shape index: {}]
  %s8 = sld [smem:[#allocation0]]
  $region62: #{tpu_custom_call.1} parent=0
    _
  %s10 = ssub.s32 1, %s8
  %s11 = scalar_select 0, %s10, %s8
  $region1: #{tpu_custom_call.1} parent=0
    #allocation2 [shape = 'u8[1024]{0}', space=vmem, size = 0x400, scoped, tag = 'input window, operand 0, single buffered']
    #allocation3 [shape = 's32[1]{0}', space=sflag, size = 0x4, scoped, tag = 'scoped memory for tpu_custom_call.1']
    #allocation4 [shape = 's32[1]{0}', space=sflag, size = 0x4, scoped, tag = 'scoped memory for tpu_custom_call.1']
    #allocation5 [shape = 'u8[1024]{0}', space=vmem, size = 0x400, scoped, tag = 'input window, operand 1, single buffered']
    #allocation6 [shape = 's32[1]{0}', space=sflag, size = 0x4, scoped, tag = 'scoped memory for tpu_custom_call.1']
    #allocation7 [shape = 'u8[65536]{0}', space=vmem, size = 0x10000, scoped, tag = 'input window, operand 2, single buffered']
    #allocation8 [shape = 'u8[65536]{0}', space=vmem, size = 0x10000, scoped, tag = 'input window, operand 3, single buffered']
    #allocation9 [shape = 's32[1]{0}', space=sflag, size = 0x4, scoped, tag = 'scoped memory for tpu_custom_call.1']
    #allocation10 [shape = 'u8[8192]{0}', space=vmem, size = 0x2000, scoped, tag = 'input window, operand 4, single buffered']
    #allocation11 [shape = 'u8[393216]{0}', space=vmem, size = 0x60000, scoped, tag = 'input window, operand 5, single buffered']
    #allocation12 [shape = 's32[1]{0}', space=sflag, size = 0x4, scoped, tag = 'scoped memory for tpu_custom_call.1']
    #allocation13 [shape = 'u8[6144]{0}', space=vmem, size = 0x1800, scoped, tag = 'output window, operand 0, single buffered']
    %12 = vsyncpa [#allocation3], 0
    %13 = vsyncpa [#allocation6], 0
    %14 = vsyncpa [#allocation9], 0
    %15 = vsyncpa [#allocation12], 0
    %16 = vsyncpa [#allocation4], 0
    // Predicated region
    $region2: #{tpu_custom_call.1} parent=1 // pred_check
      _
    $region3: #{tpu_custom_call.1} parent=1 // pred_check_branch
      %18 = sbr.rel (0) target = $region5
    $region4: #{tpu_custom_call.1} parent=1 // pred_region
      %s20 = ssub.s32 32, 32
      %21 = vsyncadd [#allocation3], %s20
      %s23 = sshll.u32 [#allocation2], 4
      %s24 = int_to_ptr.vmem [resolvable:$true] %s23
      %26 = dma.hbm_to_vmem [thread:$0]  %s0, 32, %s24, [#allocation3]
    $region5: #{tpu_custom_call.1} parent=1 // pred_fallthru
      _
    // Predicated region
    $region6: #{tpu_custom_call.1} parent=1 // pred_check
      _
    $region7: #{tpu_custom_call.1} parent=1 // pred_check_branch
      %28 = sbr.rel (0) target = $region9
    $region8: #{tpu_custom_call.1} parent=1 // pred_region
      %s30 = ssub.s32 32, 32
      %31 = vsyncadd [#allocation6], %s30
      %s33 = sshll.u32 [#allocation5], 4
      %s34 = int_to_ptr.vmem [resolvable:$true] %s33
      %36 = dma.hbm_to_vmem [thread:$0]  %s1, 32, %s34, [#allocation6]
    $region9: #{tpu_custom_call.1} parent=1 // pred_fallthru
      _
    // Predicated region
    $region10: #{tpu_custom_call.1} parent=1 // pred_check
      _
    $region11: #{tpu_custom_call.1} parent=1 // pred_check_branch
      %38 = sbr.rel (0) target = $region13
    $region12: #{tpu_custom_call.1} parent=1 // pred_region
      %s40 = ssub.s32 2048, 2048
      %41 = vsyncadd [#allocation6], %s40
      %s42 = sshll.u32 [#allocation7], 4
      %s43 = int_to_ptr.vmem [resolvable:$true] %s42
      %48 = dma.hbm_to_vmem [thread:$0]  %s2, 2048, %s43, [#allocation6], 128, 128, 8
    $region13: #{tpu_custom_call.1} parent=1 // pred_fallthru
      _
    // Predicated region
    $region14: #{tpu_custom_call.1} parent=1 // pred_check
      _
    $region15: #{tpu_custom_call.1} parent=1 // pred_check_branch
      %50 = sbr.rel (0) target = $region17
    $region16: #{tpu_custom_call.1} parent=1 // pred_region
      %s52 = ssub.s32 2048, 2048
      %53 = vsyncadd [#allocation9], %s52
      %s54 = sshll.u32 [#allocation8], 4
      %s55 = int_to_ptr.vmem [resolvable:$true] %s54
      %60 = dma.hbm_to_vmem [thread:$0]  %s3, 2048, %s55, [#allocation9], 128, 128, 8
    $region17: #{tpu_custom_call.1} parent=1 // pred_fallthru
      _
    // Predicated region
    $region18: #{tpu_custom_call.1} parent=1 // pred_check
      _
    $region19: #{tpu_custom_call.1} parent=1 // pred_check_branch
      %62 = sbr.rel (0) target = $region21
    $region20: #{tpu_custom_call.1} parent=1 // pred_region
      %s64 = ssub.s32 256, 256
      %65 = vsyncadd [#allocation9], %s64
      %s67 = sshll.u32 [#allocation10], 4
      %s68 = int_to_ptr.vmem [resolvable:$true] %s67
      %70 = dma.hbm_to_vmem [thread:$0]  %s4, 256, %s68, [#allocation9]
    $region21: #{tpu_custom_call.1} parent=1 // pred_fallthru
      _
    // Predicated region
    $region22: #{tpu_custom_call.1} parent=1 // pred_check
      _
    $region23: #{tpu_custom_call.1} parent=1 // pred_check_branch
      %72 = sbr.rel (0) target = $region25
    $region24: #{tpu_custom_call.1} parent=1 // pred_region
      %s74 = ssub.s32 12288, 12288
      %75 = vsyncadd [#allocation12], %s74
      %s76 = sshll.u32 [#allocation11], 4
      %s77 = int_to_ptr.vmem [resolvable:$true] %s76
      %82 = dma.hbm_to_vmem [thread:$0]  %s5, 12288, %s77, [#allocation12], 384, 384, 24
    $region25: #{tpu_custom_call.1} parent=1 // pred_fallthru
      _
    // Predicated region
    $region26: #{tpu_custom_call.1} parent=1 // pred_check
      _
    $region27: #{tpu_custom_call.1} parent=1 // pred_check_branch
      %84 = sbr.rel (0) target = $region29
    $region28: #{tpu_custom_call.1} parent=1 // pred_region
      _
    $region29: #{tpu_custom_call.1} parent=1 // pred_fallthru
      _
    // Predicated region
    $region30: #{tpu_custom_call.1} parent=1 // pred_check
      _
    $region31: #{tpu_custom_call.1} parent=1 // pred_check_branch
      %86 = sbr.rel (0) target = $region33
    $region32: #{tpu_custom_call.1} parent=1 // pred_region
      %87 = dma.done [#allocation3], 32
    $region33: #{tpu_custom_call.1} parent=1 // pred_fallthru
      _
    // Predicated region
    $region34: #{tpu_custom_call.1} parent=1 // pred_check
      _
    $region35: #{tpu_custom_call.1} parent=1 // pred_check_branch
      %89 = sbr.rel (0) target = $region37
    $region36: #{tpu_custom_call.1} parent=1 // pred_region
      %90 = dma.done [#allocation6], 32
    $region37: #{tpu_custom_call.1} parent=1 // pred_fallthru
      _
    // Predicated region
    $region38: #{tpu_custom_call.1} parent=1 // pred_check
      _
    $region39: #{tpu_custom_call.1} parent=1 // pred_check_branch
      %92 = sbr.rel (0) target = $region41
    $region40: #{tpu_custom_call.1} parent=1 // pred_region
      %93 = dma.done [#allocation6], 2048
    $region41: #{tpu_custom_call.1} parent=1 // pred_fallthru
      _
    // Predicated region
    $region42: #{tpu_custom_call.1} parent=1 // pred_check
      _
    $region43: #{tpu_custom_call.1} parent=1 // pred_check_branch
      %95 = sbr.rel (0) target = $region45
    $region44: #{tpu_custom_call.1} parent=1 // pred_region
      %96 = dma.done [#allocation9], 2048
    $region45: #{tpu_custom_call.1} parent=1 // pred_fallthru
      _
    // Predicated region
    $region46: #{tpu_custom_call.1} parent=1 // pred_check
      _
    $region47: #{tpu_custom_call.1} parent=1 // pred_check_branch
      %98 = sbr.rel (0) target = $region49
    $region48: #{tpu_custom_call.1} parent=1 // pred_region
      %99 = dma.done [#allocation9], 256
    $region49: #{tpu_custom_call.1} parent=1 // pred_fallthru
      _
    // Predicated region
    $region50: #{tpu_custom_call.1} parent=1 // pred_check
      _
    $region51: #{tpu_custom_call.1} parent=1 // pred_check_branch
      %101 = sbr.rel (0) target = $region53
    $region52: #{tpu_custom_call.1} parent=1 // pred_region
      %102 = dma.done [#allocation12], 12288
    $region53: #{tpu_custom_call.1} parent=1 // pred_fallthru
      _
    %v104 = vlaneseq
    %v105 = vand.u32 %v104, 127
    %v106 = vld [vmem:[#allocation2] sm:$0x3]
    %v107 = vlaneseq
    %v108 = vshrl.u32 %v107, 7
    %v109 = vsub.s32 0, %v108
    %v110 = vrot.slane %v106, %v109
    %112 = vbcast.lane.b32.xlu0 %v110, 256
    %v113 = vpop.permute.xlu0 %112
    %v114 = vlaneseq
    %v115 = vshrl.u32 %v114, 7
    %v116 = vsub.s32 1, %v115
    %v117 = vrot.slane %v106, %v116
    %119 = vbcast.lane.b32.xlu0 %v117, 256
    %v120 = vpop.permute.xlu0 %119
    %vm121 = vcmp.eq.s32.totalorder %v113, %v105
    %vm122 = vcmp.eq.s32.totalorder %v120, %v105
    %v123 = vsel %vm121, 1, 0
    %v124 = vsel %vm122, 1, 0
    %v125 = vcvt.s32.f32 %v123
    %v126 = vcvt.s32.f32 %v124
    %v127 = vld [vmem:[#allocation5] sm:$0x3]
    %v128 = vlaneseq
    %v129 = vshrl.u32 %v128, 7
    %v130 = vsub.s32 0, %v129
    %v131 = vrot.slane %v127, %v130
    %133 = vbcast.lane.b32.xlu0 %v131, 256
    %v134 = vpop.permute.xlu0 %133
    %v135 = vlaneseq
    %v136 = vshrl.u32 %v135, 7
    %v137 = vsub.s32 1, %v136
    %v138 = vrot.slane %v127, %v137
    %140 = vbcast.lane.b32.xlu0 %v138, 256
    %v141 = vpop.permute.xlu0 %140
    %vm142 = vcmp.eq.s32.totalorder %v134, %v105
    %vm143 = vcmp.eq.s32.totalorder %v141, %v105
    %v144 = vsel %vm142, 1, 0
    %v145 = vsel %vm143, 1, 0
    %v146 = vcvt.s32.f32 %v144
    %v147 = vcvt.s32.f32 %v145
    %v148 = vrot.slane %v125, 4
    %v149 = vadd.f32 %v125, %v148
    %v150 = vrot.slane %v149, 2
    %v151 = vadd.f32 %v149, %v150
    %v152 = vrot.slane %v151, 1
    %v153 = vadd.f32 %v151, %v152
    %v154 = vrot.slane %v126, 4
    %v155 = vadd.f32 %v126, %v154
    %v156 = vrot.slane %v155, 2
    %v157 = vadd.f32 %v155, %v156
    %v158 = vrot.slane %v157, 1
    %v159 = vadd.f32 %v157, %v158
    %v160 = vpack.c.bf16 %v153, %v153
    %v161 = vpack.c.bf16 %v159, %v159
    %v162 = vrot.slane %v146, 4
    %v163 = vadd.f32 %v146, %v162
    %v164 = vrot.slane %v163, 2
    %v165 = vadd.f32 %v163, %v164
    %v166 = vrot.slane %v165, 1
    %v167 = vadd.f32 %v165, %v166
    %v168 = vrot.slane %v147, 4
    %v169 = vadd.f32 %v147, %v168
    %v170 = vrot.slane %v169, 2
    %v171 = vadd.f32 %v169, %v170
    %v172 = vrot.slane %v171, 1
    %v173 = vadd.f32 %v171, %v172
    %v174 = vpack.c.bf16 %v167, %v167
    %v175 = vpack.c.bf16 %v173, %v173
    %v176 = vld [vmem:[#allocation7] sm:$0xff]
    %v177 = vld [vmem:[#allocation7 + $0x8] sm:$0xff]
    %v178 = vld [vmem:[#allocation7 + $0x10] sm:$0xff]
    %v179 = vld [vmem:[#allocation7 + $0x18] sm:$0xff]
    %v180 = vld [vmem:[#allocation7 + $0x20] sm:$0xff]
    %v181 = vld [vmem:[#allocation7 + $0x28] sm:$0xff]
    %v182 = vld [vmem:[#allocation7 + $0x30] sm:$0xff]
    %v183 = vld [vmem:[#allocation7 + $0x38] sm:$0xff]
    %v184 = vld [vmem:[#allocation7 + $0x40] sm:$0xff]
    %v185 = vld [vmem:[#allocation7 + $0x48] sm:$0xff]
    %v186 = vld [vmem:[#allocation7 + $0x50] sm:$0xff]
    %v187 = vld [vmem:[#allocation7 + $0x58] sm:$0xff]
    %v188 = vld [vmem:[#allocation7 + $0x60] sm:$0xff]
    %v189 = vld [vmem:[#allocation7 + $0x68] sm:$0xff]
    %v190 = vld [vmem:[#allocation7 + $0x70] sm:$0xff]
    %v191 = vld [vmem:[#allocation7 + $0x78] sm:$0xff]
    %v192 = vld [vmem:[#allocation8] sm:$0xff]
    %v193 = vld [vmem:[#allocation8 + $0x8] sm:$0xff]
    %v194 = vld [vmem:[#allocation8 + $0x10] sm:$0xff]
    %v195 = vld [vmem:[#allocation8 + $0x18] sm:$0xff]
    %v196 = vld [vmem:[#allocation8 + $0x20] sm:$0xff]
    %v197 = vld [vmem:[#allocation8 + $0x28] sm:$0xff]
    %v198 = vld [vmem:[#allocation8 + $0x30] sm:$0xff]
    %v199 = vld [vmem:[#allocation8 + $0x38] sm:$0xff]
    %v200 = vld [vmem:[#allocation8 + $0x40] sm:$0xff]
    %v201 = vld [vmem:[#allocation8 + $0x48] sm:$0xff]
    %v202 = vld [vmem:[#allocation8 + $0x50] sm:$0xff]
    %v203 = vld [vmem:[#allocation8 + $0x58] sm:$0xff]
    %v204 = vld [vmem:[#allocation8 + $0x60] sm:$0xff]
    %v205 = vld [vmem:[#allocation8 + $0x68] sm:$0xff]
    %v206 = vld [vmem:[#allocation8 + $0x70] sm:$0xff]
    %v207 = vld [vmem:[#allocation8 + $0x78] sm:$0xff]
    %v210 = vunpack.c.l.b16 %v174
    %v211 = vunpack.c.l.b16 %v175
    %vm212 = vcmask 1041409
    %v213 = vsel %vm212, %v211, %v210
    %v214 = vpack.c.b16 %v213, %v213
    %v232 = vunpack.c.l.b16 %v192
    %v233 = vunpack.c.h.b16 %v192
    %v234 = vunpack.c.l.b16 %v193
    %v235 = vunpack.c.h.b16 %v193
    %v236 = vunpack.c.l.b16 %v194
    %v237 = vunpack.c.h.b16 %v194
    %v238 = vunpack.c.l.b16 %v195
    %v239 = vunpack.c.h.b16 %v195
    %v240 = vunpack.c.l.b16 %v196
    %v241 = vunpack.c.h.b16 %v196
    %v242 = vunpack.c.l.b16 %v197
    %v243 = vunpack.c.h.b16 %v197
    %v244 = vunpack.c.l.b16 %v198
    %v245 = vunpack.c.h.b16 %v198
    %v246 = vunpack.c.l.b16 %v199
    %v247 = vunpack.c.h.b16 %v199
    %v248 = vunpack.c.l.b16 %v200
    %v249 = vunpack.c.h.b16 %v200
    %v250 = vunpack.c.l.b16 %v201
    %v251 = vunpack.c.h.b16 %v201
    %v252 = vunpack.c.l.b16 %v202
    %v253 = vunpack.c.h.b16 %v202
    %v254 = vunpack.c.l.b16 %v203
    %v255 = vunpack.c.h.b16 %v203
    %v256 = vunpack.c.l.b16 %v204
    %v257 = vunpack.c.h.b16 %v204
    %v258 = vunpack.c.l.b16 %v205
    %v259 = vunpack.c.h.b16 %v205
    %v260 = vunpack.c.l.b16 %v206
    %v261 = vunpack.c.h.b16 %v206
    %v262 = vunpack.c.l.b16 %v207
    %v263 = vunpack.c.h.b16 %v207
    %v264 = vpack.c.b16 %v234, %v232
    %v265 = vpack.c.b16 %v235, %v233
    %v266 = vpack.c.b16 %v238, %v236
    %v267 = vpack.c.b16 %v239, %v237
    %v268 = vpack.c.b16 %v242, %v240
    %v269 = vpack.c.b16 %v243, %v241
    %v270 = vpack.c.b16 %v246, %v244
    %v271 = vpack.c.b16 %v247, %v245
    %v272 = vpack.c.b16 %v250, %v248
    %v273 = vpack.c.b16 %v251, %v249
    %v274 = vpack.c.b16 %v254, %v252
    %v275 = vpack.c.b16 %v255, %v253
    %v276 = vpack.c.b16 %v258, %v256
    %v277 = vpack.c.b16 %v259, %v257
    %v278 = vpack.c.b16 %v262, %v260
    %v279 = vpack.c.b16 %v263, %v261
    %296 = vmatprep.subr.bf16.mxu0 %v279
    %297 = vmatpush1.bf16.msra.mxu0 %v278
    %298 = vmatprep.subr.bf16.mxu0 %v277
    %299 = vmatpush1.bf16.msra.mxu0 %v276
    %300 = vmatprep.subr.bf16.mxu0 %v275
    %301 = vmatpush1.bf16.msra.mxu0 %v274
    %302 = vmatprep.subr.bf16.mxu0 %v273
    %303 = vmatpush1.bf16.msra.mxu0 %v272
    %304 = vmatprep.subr.bf16.mxu0 %v271
    %305 = vmatpush1.bf16.msra.mxu0 %v270
    %306 = vmatprep.subr.bf16.mxu0 %v269
    %307 = vmatpush1.bf16.msra.mxu0 %v268
    %308 = vmatprep.subr.bf16.mxu0 %v267
    %309 = vmatpush1.bf16.msra.mxu0 %v266
    %310 = vmatprep.subr.bf16.mxu0 %v265
    %311 = vmatpush1.bf16.msra.mxu0 %v264
    %312 = vmatprep.subr.bf16.mxu0 0
    %313 = vmatpush2.bf16.msra.mxu0 0
    %314 = vmatprep.subr.bf16.mxu0 0
    %315 = vmatpush2.bf16.msra.mxu0 0
    %316 = vmatprep.subr.bf16.mxu0 0
    %317 = vmatpush2.bf16.msra.mxu0 0
    %318 = vmatprep.subr.bf16.mxu0 0
    %319 = vmatpush2.bf16.msra.mxu0 0
    %320 = vmatprep.subr.bf16.mxu0 0
    %321 = vmatpush2.bf16.msra.mxu0 0
    %322 = vmatprep.subr.bf16.mxu0 0
    %323 = vmatpush2.bf16.msra.mxu0 0
    %324 = vmatprep.subr.bf16.mxu0 0
    %325 = vmatpush2.bf16.msra.mxu0 0
    %326 = vmatprep.subr.bf16.mxu0 0
    %327 = vmatpush2.bf16.msra.mxu0 0
    %328 = vmatprep.mubr.bf16.mxu0 0
    %329 = vmatmul.mubr.bf16.gmra.mxu0 %v214
    %v330 = vpop.f32.mrf.mxu0
    %v331 = vadd.f32 0.0, %v330
    %v332 = vpop.f32.mrf.mxu0
    %v333 = vadd.f32 0.0, %v332
    %v334 = vpop.f32.mrf.mxu0
    %v335 = vpop.f32.mrf.mxu0
    %336 = vdwg.mxu0
    %v337 = vld [vmem:[#allocation10] sm:$0xff]
    %v338 = vld [vmem:[#allocation10 + $0x8] sm:$0xff]
    %v339 = vrot.slane %v337, 4
    %v340 = vadd.f32 %v337, %v339
    %v341 = vrot.slane %v340, 2
    %v342 = vadd.f32 %v340, %v341
    %v343 = vrot.slane %v342, 1
    %v344 = vadd.f32 %v342, %v343
    %v345 = vrot.slane %v338, 4
    %v346 = vadd.f32 %v338, %v345
    %v347 = vrot.slane %v346, 2
    %v348 = vadd.f32 %v346, %v347
    %v349 = vrot.slane %v348, 1
    %v350 = vadd.f32 %v348, %v349
    %v353 = vunpack.c.l.b16 %v160
    %v354 = vunpack.c.l.b16 %v161
    %v355 = vsel %vm212, %v354, %v353
    %v356 = vpack.c.b16 %v355, %v355
    %v374 = vunpack.c.l.b16 %v176
    %v375 = vunpack.c.h.b16 %v176
    %v376 = vunpack.c.l.b16 %v177
    %v377 = vunpack.c.h.b16 %v177
    %v378 = vunpack.c.l.b16 %v178
    %v379 = vunpack.c.h.b16 %v178
    %v380 = vunpack.c.l.b16 %v179
    %v381 = vunpack.c.h.b16 %v179
    %v382 = vunpack.c.l.b16 %v180
    %v383 = vunpack.c.h.b16 %v180
    %v384 = vunpack.c.l.b16 %v181
    %v385 = vunpack.c.h.b16 %v181
    %v386 = vunpack.c.l.b16 %v182
    %v387 = vunpack.c.h.b16 %v182
    %v388 = vunpack.c.l.b16 %v183
    %v389 = vunpack.c.h.b16 %v183
    %v390 = vunpack.c.l.b16 %v184
    %v391 = vunpack.c.h.b16 %v184
    %v392 = vunpack.c.l.b16 %v185
    %v393 = vunpack.c.h.b16 %v185
    %v394 = vunpack.c.l.b16 %v186
    %v395 = vunpack.c.h.b16 %v186
    %v396 = vunpack.c.l.b16 %v187
    %v397 = vunpack.c.h.b16 %v187
    %v398 = vunpack.c.l.b16 %v188
    %v399 = vunpack.c.h.b16 %v188
    %v400 = vunpack.c.l.b16 %v189
    %v401 = vunpack.c.h.b16 %v189
    %v402 = vunpack.c.l.b16 %v190
    %v403 = vunpack.c.h.b16 %v190
    %v404 = vunpack.c.l.b16 %v191
    %v405 = vunpack.c.h.b16 %v191
    %v406 = vpack.c.b16 %v376, %v374
    %v407 = vpack.c.b16 %v377, %v375
    %v408 = vpack.c.b16 %v380, %v378
    %v409 = vpack.c.b16 %v381, %v379
    %v410 = vpack.c.b16 %v384, %v382
    %v411 = vpack.c.b16 %v385, %v383
    %v412 = vpack.c.b16 %v388, %v386
    %v413 = vpack.c.b16 %v389, %v387
    %v414 = vpack.c.b16 %v392, %v390
    %v415 = vpack.c.b16 %v393, %v391
    %v416 = vpack.c.b16 %v396, %v394
    %v417 = vpack.c.b16 %v397, %v395
    %v418 = vpack.c.b16 %v400, %v398
    %v419 = vpack.c.b16 %v401, %v399
    %v420 = vpack.c.b16 %v404, %v402
    %v421 = vpack.c.b16 %v405, %v403
    %438 = vmatprep.subr.bf16.mxu0 %v421
    %439 = vmatpush1.bf16.msra.mxu0 %v420
    %440 = vmatprep.subr.bf16.mxu0 %v419
    %441 = vmatpush1.bf16.msra.mxu0 %v418
    %442 = vmatprep.subr.bf16.mxu0 %v417
    %443 = vmatpush1.bf16.msra.mxu0 %v416
    %444 = vmatprep.subr.bf16.mxu0 %v415
    %445 = vmatpush1.bf16.msra.mxu0 %v414
    %446 = vmatprep.subr.bf16.mxu0 %v413
    %447 = vmatpush1.bf16.msra.mxu0 %v412
    %448 = vmatprep.subr.bf16.mxu0 %v411
    %449 = vmatpush1.bf16.msra.mxu0 %v410
    %450 = vmatprep.subr.bf16.mxu0 %v409
    %451 = vmatpush1.bf16.msra.mxu0 %v408
    %452 = vmatprep.subr.bf16.mxu0 %v407
    %453 = vmatpush1.bf16.msra.mxu0 %v406
    %454 = vmatprep.subr.bf16.mxu0 0
    %455 = vmatpush2.bf16.msra.mxu0 0
    %456 = vmatprep.subr.bf16.mxu0 0
    %457 = vmatpush2.bf16.msra.mxu0 0
    %458 = vmatprep.subr.bf16.mxu0 0
    %459 = vmatpush2.bf16.msra.mxu0 0
    %460 = vmatprep.subr.bf16.mxu0 0
    %461 = vmatpush2.bf16.msra.mxu0 0
    %462 = vmatprep.subr.bf16.mxu0 0
    %463 = vmatpush2.bf16.msra.mxu0 0
    %464 = vmatprep.subr.bf16.mxu0 0
    %465 = vmatpush2.bf16.msra.mxu0 0
    %466 = vmatprep.subr.bf16.mxu0 0
    %467 = vmatpush2.bf16.msra.mxu0 0
    %468 = vmatprep.subr.bf16.mxu0 0
    %469 = vmatpush2.bf16.msra.mxu0 0
    %470 = vmatprep.mubr.bf16.mxu0 0
    %471 = vmatmul.mubr.bf16.gmra.mxu0 %v356
    %v472 = vpop.f32.mrf.mxu0
    %v473 = vadd.f32 %v331, %v472
    %v474 = vpop.f32.mrf.mxu0
    %v475 = vadd.f32 %v333, %v474
    %v476 = vpop.f32.mrf.mxu0
    %v477 = vpop.f32.mrf.mxu0
    %478 = vdwg.mxu0
    %v479 = vadd.f32 %v473, %v344
    %v480 = vadd.f32 %v475, %v350
    %v481 = vmul.f32 %v479, 0.125
    %v482 = vmul.f32 %v480, 0.125
    %v483 = vpack.c.bf16 %v481, %v481
    %v484 = vpack.c.bf16 %v482, %v482
    %v485 = vld [vmem:[#allocation11] sm:$0xff]
    %v486 = vld [vmem:[#allocation11 + $0x8] sm:$0xff]
    %v487 = vld [vmem:[#allocation11 + $0x10] sm:$0xff]
    %v488 = vld [vmem:[#allocation11 + $0x18] sm:$0xff]
    %v489 = vld [vmem:[#allocation11 + $0x20] sm:$0xff]
    %v490 = vld [vmem:[#allocation11 + $0x28] sm:$0xff]
    %v491 = vld [vmem:[#allocation11 + $0x30] sm:$0xff]
    %v492 = vld [vmem:[#allocation11 + $0x38] sm:$0xff]
    %v493 = vld [vmem:[#allocation11 + $0x40] sm:$0xff]
    %v494 = vld [vmem:[#allocation11 + $0x48] sm:$0xff]
    %v495 = vld [vmem:[#allocation11 + $0x50] sm:$0xff]
    %v496 = vld [vmem:[#allocation11 + $0x58] sm:$0xff]
    %v497 = vld [vmem:[#allocation11 + $0x60] sm:$0xff]
    %v498 = vld [vmem:[#allocation11 + $0x68] sm:$0xff]
    %v499 = vld [vmem:[#allocation11 + $0x70] sm:$0xff]
    %v500 = vld [vmem:[#allocation11 + $0x78] sm:$0xff]
    %v501 = vld [vmem:[#allocation11 + $0x80] sm:$0xff]
    %v502 = vld [vmem:[#allocation11 + $0x88] sm:$0xff]
    %v503 = vld [vmem:[#allocation11 + $0x90] sm:$0xff]
    %v504 = vld [vmem:[#allocation11 + $0x98] sm:$0xff]
    %v505 = vld [vmem:[#allocation11 + $0xa0] sm:$0xff]
    %v506 = vld [vmem:[#allocation11 + $0xa8] sm:$0xff]
    %v507 = vld [vmem:[#allocation11 + $0xb0] sm:$0xff]
    %v508 = vld [vmem:[#allocation11 + $0xb8] sm:$0xff]
    %v509 = vld [vmem:[#allocation11 + $0xc0] sm:$0xff]
    %v510 = vld [vmem:[#allocation11 + $0xc8] sm:$0xff]
    %v511 = vld [vmem:[#allocation11 + $0xd0] sm:$0xff]
    %v512 = vld [vmem:[#allocation11 + $0xd8] sm:$0xff]
    %v513 = vld [vmem:[#allocation11 + $0xe0] sm:$0xff]
    %v514 = vld [vmem:[#allocation11 + $0xe8] sm:$0xff]
    %v515 = vld [vmem:[#allocation11 + $0xf0] sm:$0xff]
    %v516 = vld [vmem:[#allocation11 + $0xf8] sm:$0xff]
    %v517 = vld [vmem:[#allocation11 + $0x100] sm:$0xff]
    %v518 = vld [vmem:[#allocation11 + $0x108] sm:$0xff]
    %v519 = vld [vmem:[#allocation11 + $0x110] sm:$0xff]
    %v520 = vld [vmem:[#allocation11 + $0x118] sm:$0xff]
    %v521 = vld [vmem:[#allocation11 + $0x120] sm:$0xff]
    %v522 = vld [vmem:[#allocation11 + $0x128] sm:$0xff]
    %v523 = vld [vmem:[#allocation11 + $0x130] sm:$0xff]
    %v524 = vld [vmem:[#allocation11 + $0x138] sm:$0xff]
    %v525 = vld [vmem:[#allocation11 + $0x140] sm:$0xff]
    %v526 = vld [vmem:[#allocation11 + $0x148] sm:$0xff]
    %v527 = vld [vmem:[#allocation11 + $0x150] sm:$0xff]
    %v528 = vld [vmem:[#allocation11 + $0x158] sm:$0xff]
    %v529 = vld [vmem:[#allocation11 + $0x160] sm:$0xff]
    %v530 = vld [vmem:[#allocation11 + $0x168] sm:$0xff]
    %v531 = vld [vmem:[#allocation11 + $0x170] sm:$0xff]
    %v532 = vld [vmem:[#allocation11 + $0x178] sm:$0xff]
    %v533 = vld [vmem:[#allocation11 + $0x180] sm:$0xff]
    %v534 = vld [vmem:[#allocation11 + $0x188] sm:$0xff]
    %v535 = vld [vmem:[#allocation11 + $0x190] sm:$0xff]
    %v536 = vld [vmem:[#allocation11 + $0x198] sm:$0xff]
    %v537 = vld [vmem:[#allocation11 + $0x1a0] sm:$0xff]
    %v538 = vld [vmem:[#allocation11 + $0x1a8] sm:$0xff]
    %v539 = vld [vmem:[#allocation11 + $0x1b0] sm:$0xff]
    %v540 = vld [vmem:[#allocation11 + $0x1b8] sm:$0xff]
    %v541 = vld [vmem:[#allocation11 + $0x1c0] sm:$0xff]
    %v542 = vld [vmem:[#allocation11 + $0x1c8] sm:$0xff]
    %v543 = vld [vmem:[#allocation11 + $0x1d0] sm:$0xff]
    %v544 = vld [vmem:[#allocation11 + $0x1d8] sm:$0xff]
    %v545 = vld [vmem:[#allocation11 + $0x1e0] sm:$0xff]
    %v546 = vld [vmem:[#allocation11 + $0x1e8] sm:$0xff]
    %v547 = vld [vmem:[#allocation11 + $0x1f0] sm:$0xff]
    %v548 = vld [vmem:[#allocation11 + $0x1f8] sm:$0xff]
    %v549 = vld [vmem:[#allocation11 + $0x200] sm:$0xff]
    %v550 = vld [vmem:[#allocation11 + $0x208] sm:$0xff]
    %v551 = vld [vmem:[#allocation11 + $0x210] sm:$0xff]
    %v552 = vld [vmem:[#allocation11 + $0x218] sm:$0xff]
    %v553 = vld [vmem:[#allocation11 + $0x220] sm:$0xff]
    %v554 = vld [vmem:[#allocation11 + $0x228] sm:$0xff]
    %v555 = vld [vmem:[#allocation11 + $0x230] sm:$0xff]
    %v556 = vld [vmem:[#allocation11 + $0x238] sm:$0xff]
    %v557 = vld [vmem:[#allocation11 + $0x240] sm:$0xff]
    %v558 = vld [vmem:[#allocation11 + $0x248] sm:$0xff]
    %v559 = vld [vmem:[#allocation11 + $0x250] sm:$0xff]
    %v560 = vld [vmem:[#allocation11 + $0x258] sm:$0xff]
    %v561 = vld [vmem:[#allocation11 + $0x260] sm:$0xff]
    %v562 = vld [vmem:[#allocation11 + $0x268] sm:$0xff]
    %v563 = vld [vmem:[#allocation11 + $0x270] sm:$0xff]
    %v564 = vld [vmem:[#allocation11 + $0x278] sm:$0xff]
    %v565 = vld [vmem:[#allocation11 + $0x280] sm:$0xff]
    %v566 = vld [vmem:[#allocation11 + $0x288] sm:$0xff]
    %v567 = vld [vmem:[#allocation11 + $0x290] sm:$0xff]
    %v568 = vld [vmem:[#allocation11 + $0x298] sm:$0xff]
    %v569 = vld [vmem:[#allocation11 + $0x2a0] sm:$0xff]
    %v570 = vld [vmem:[#allocation11 + $0x2a8] sm:$0xff]
    %v571 = vld [vmem:[#allocation11 + $0x2b0] sm:$0xff]
    %v572 = vld [vmem:[#allocation11 + $0x2b8] sm:$0xff]
    %v573 = vld [vmem:[#allocation11 + $0x2c0] sm:$0xff]
    %v574 = vld [vmem:[#allocation11 + $0x2c8] sm:$0xff]
    %v575 = vld [vmem:[#allocation11 + $0x2d0] sm:$0xff]
    %v576 = vld [vmem:[#allocation11 + $0x2d8] sm:$0xff]
    %v577 = vld [vmem:[#allocation11 + $0x2e0] sm:$0xff]
    %v578 = vld [vmem:[#allocation11 + $0x2e8] sm:$0xff]
    %v579 = vld [vmem:[#allocation11 + $0x2f0] sm:$0xff]
    %v580 = vld [vmem:[#allocation11 + $0x2f8] sm:$0xff]
    %v581 = vld [vmem:[%s6] sm:$0x3f]
    %v583 = vlaneseq
    %v584 = vshrl.u32 %v583, 7
    %v585 = vsub.s32 0, %v584
    %v586 = vrot.slane %v581, %v585
    %v587 = vlaneseq
    %v588 = vshrl.u32 %v587, 7
    %v589 = vsub.s32 1, %v588
    %v590 = vrot.slane %v581, %v589
    %v591 = vlaneseq
    %v592 = vshrl.u32 %v591, 7
    %v593 = vsub.s32 2, %v592
    %v594 = vrot.slane %v581, %v593
    %v595 = vlaneseq
    %v596 = vshrl.u32 %v595, 7
    %v597 = vsub.s32 3, %v596
    %v598 = vrot.slane %v581, %v597
    %v599 = vlaneseq
    %v600 = vshrl.u32 %v599, 7
    %v601 = vsub.s32 4, %v600
    %v602 = vrot.slane %v581, %v601
    %v603 = vlaneseq
    %v604 = vshrl.u32 %v603, 7
    %v605 = vsub.s32 5, %v604
    %v606 = vrot.slane %v581, %v605
    %v709 = vunpack.c.l.b16 %v485
    %v710 = vunpack.c.h.b16 %v485
    %v711 = vunpack.c.l.b16 %v486
    %v712 = vunpack.c.h.b16 %v486
    %v713 = vunpack.c.l.b16 %v487
    %v714 = vunpack.c.h.b16 %v487
    %v715 = vunpack.c.l.b16 %v488
    %v716 = vunpack.c.h.b16 %v488
    %v717 = vunpack.c.l.b16 %v489
    %v718 = vunpack.c.h.b16 %v489
    %v719 = vunpack.c.l.b16 %v490
    %v720 = vunpack.c.h.b16 %v490
    %v721 = vunpack.c.l.b16 %v491
    %v722 = vunpack.c.h.b16 %v491
    %v723 = vunpack.c.l.b16 %v492
    %v724 = vunpack.c.h.b16 %v492
    %v725 = vunpack.c.l.b16 %v493
    %v726 = vunpack.c.h.b16 %v493
    %v727 = vunpack.c.l.b16 %v494
    %v728 = vunpack.c.h.b16 %v494
    %v729 = vunpack.c.l.b16 %v495
    %v730 = vunpack.c.h.b16 %v495
    %v731 = vunpack.c.l.b16 %v496
    %v732 = vunpack.c.h.b16 %v496
    %v733 = vunpack.c.l.b16 %v497
    %v734 = vunpack.c.h.b16 %v497
    %v735 = vunpack.c.l.b16 %v498
    %v736 = vunpack.c.h.b16 %v498
    %v737 = vunpack.c.l.b16 %v499
    %v738 = vunpack.c.h.b16 %v499
    %v739 = vunpack.c.l.b16 %v500
    %v740 = vunpack.c.h.b16 %v500
    %v741 = vunpack.c.l.b16 %v501
    %v742 = vunpack.c.h.b16 %v501
    %v743 = vunpack.c.l.b16 %v502
    %v744 = vunpack.c.h.b16 %v502
    %v745 = vunpack.c.l.b16 %v503
    %v746 = vunpack.c.h.b16 %v503
    %v747 = vunpack.c.l.b16 %v504
    %v748 = vunpack.c.h.b16 %v504
    %v749 = vunpack.c.l.b16 %v505
    %v750 = vunpack.c.h.b16 %v505
    %v751 = vunpack.c.l.b16 %v506
    %v752 = vunpack.c.h.b16 %v506
    %v753 = vunpack.c.l.b16 %v507
    %v754 = vunpack.c.h.b16 %v507
    %v755 = vunpack.c.l.b16 %v508
    %v756 = vunpack.c.h.b16 %v508
    %v757 = vunpack.c.l.b16 %v509
    %v758 = vunpack.c.h.b16 %v509
    %v759 = vunpack.c.l.b16 %v510
    %v760 = vunpack.c.h.b16 %v510
    %v761 = vunpack.c.l.b16 %v511
    %v762 = vunpack.c.h.b16 %v511
    %v763 = vunpack.c.l.b16 %v512
    %v764 = vunpack.c.h.b16 %v512
    %v765 = vunpack.c.l.b16 %v513
    %v766 = vunpack.c.h.b16 %v513
    %v767 = vunpack.c.l.b16 %v514
    %v768 = vunpack.c.h.b16 %v514
    %v769 = vunpack.c.l.b16 %v515
    %v770 = vunpack.c.h.b16 %v515
    %v771 = vunpack.c.l.b16 %v516
    %v772 = vunpack.c.h.b16 %v516
    %v773 = vunpack.c.l.b16 %v517
    %v774 = vunpack.c.h.b16 %v517
    %v775 = vunpack.c.l.b16 %v518
    %v776 = vunpack.c.h.b16 %v518
    %v777 = vunpack.c.l.b16 %v519
    %v778 = vunpack.c.h.b16 %v519
    %v779 = vunpack.c.l.b16 %v520
    %v780 = vunpack.c.h.b16 %v520
    %v781 = vunpack.c.l.b16 %v521
    %v782 = vunpack.c.h.b16 %v521
    %v783 = vunpack.c.l.b16 %v522
    %v784 = vunpack.c.h.b16 %v522
    %v785 = vunpack.c.l.b16 %v523
    %v786 = vunpack.c.h.b16 %v523
    %v787 = vunpack.c.l.b16 %v524
    %v788 = vunpack.c.h.b16 %v524
    %v789 = vunpack.c.l.b16 %v525
    %v790 = vunpack.c.h.b16 %v525
    %v791 = vunpack.c.l.b16 %v526
    %v792 = vunpack.c.h.b16 %v526
    %v793 = vunpack.c.l.b16 %v527
    %v794 = vunpack.c.h.b16 %v527
    %v795 = vunpack.c.l.b16 %v528
    %v796 = vunpack.c.h.b16 %v528
    %v797 = vunpack.c.l.b16 %v529
    %v798 = vunpack.c.h.b16 %v529
    %v799 = vunpack.c.l.b16 %v530
    %v800 = vunpack.c.h.b16 %v530
    %v801 = vunpack.c.l.b16 %v531
    %v802 = vunpack.c.h.b16 %v531
    %v803 = vunpack.c.l.b16 %v532
    %v804 = vunpack.c.h.b16 %v532
    %v805 = vunpack.c.l.b16 %v533
    %v806 = vunpack.c.h.b16 %v533
    %v807 = vunpack.c.l.b16 %v534
    %v808 = vunpack.c.h.b16 %v534
    %v809 = vunpack.c.l.b16 %v535
    %v810 = vunpack.c.h.b16 %v535
    %v811 = vunpack.c.l.b16 %v536
    %v812 = vunpack.c.h.b16 %v536
    %v813 = vunpack.c.l.b16 %v537
    %v814 = vunpack.c.h.b16 %v537
    %v815 = vunpack.c.l.b16 %v538
    %v816 = vunpack.c.h.b16 %v538
    %v817 = vunpack.c.l.b16 %v539
    %v818 = vunpack.c.h.b16 %v539
    %v819 = vunpack.c.l.b16 %v540
    %v820 = vunpack.c.h.b16 %v540
    %v821 = vunpack.c.l.b16 %v541
    %v822 = vunpack.c.h.b16 %v541
    %v823 = vunpack.c.l.b16 %v542
    %v824 = vunpack.c.h.b16 %v542
    %v825 = vunpack.c.l.b16 %v543
    %v826 = vunpack.c.h.b16 %v543
    %v827 = vunpack.c.l.b16 %v544
    %v828 = vunpack.c.h.b16 %v544
    %v829 = vunpack.c.l.b16 %v545
    %v830 = vunpack.c.h.b16 %v545
    %v831 = vunpack.c.l.b16 %v546
    %v832 = vunpack.c.h.b16 %v546
    %v833 = vunpack.c.l.b16 %v547
    %v834 = vunpack.c.h.b16 %v547
    %v835 = vunpack.c.l.b16 %v548
    %v836 = vunpack.c.h.b16 %v548
    %v837 = vunpack.c.l.b16 %v549
    %v838 = vunpack.c.h.b16 %v549
    %v839 = vunpack.c.l.b16 %v550
    %v840 = vunpack.c.h.b16 %v550
    %v841 = vunpack.c.l.b16 %v551
    %v842 = vunpack.c.h.b16 %v551
    %v843 = vunpack.c.l.b16 %v552
    %v844 = vunpack.c.h.b16 %v552
    %v845 = vunpack.c.l.b16 %v553
    %v846 = vunpack.c.h.b16 %v553
    %v847 = vunpack.c.l.b16 %v554
    %v848 = vunpack.c.h.b16 %v554
    %v849 = vunpack.c.l.b16 %v555
    %v850 = vunpack.c.h.b16 %v555
    %v851 = vunpack.c.l.b16 %v556
    %v852 = vunpack.c.h.b16 %v556
    %v853 = vunpack.c.l.b16 %v557
    %v854 = vunpack.c.h.b16 %v557
    %v855 = vunpack.c.l.b16 %v558
    %v856 = vunpack.c.h.b16 %v558
    %v857 = vunpack.c.l.b16 %v559
    %v858 = vunpack.c.h.b16 %v559
    %v859 = vunpack.c.l.b16 %v560
    %v860 = vunpack.c.h.b16 %v560
    %v861 = vunpack.c.l.b16 %v561
    %v862 = vunpack.c.h.b16 %v561
    %v863 = vunpack.c.l.b16 %v562
    %v864 = vunpack.c.h.b16 %v562
    %v865 = vunpack.c.l.b16 %v563
    %v866 = vunpack.c.h.b16 %v563
    %v867 = vunpack.c.l.b16 %v564
    %v868 = vunpack.c.h.b16 %v564
    %v869 = vunpack.c.l.b16 %v565
    %v870 = vunpack.c.h.b16 %v565
    %v871 = vunpack.c.l.b16 %v566
    %v872 = vunpack.c.h.b16 %v566
    %v873 = vunpack.c.l.b16 %v567
    %v874 = vunpack.c.h.b16 %v567
    %v875 = vunpack.c.l.b16 %v568
    %v876 = vunpack.c.h.b16 %v568
    %v877 = vunpack.c.l.b16 %v569
    %v878 = vunpack.c.h.b16 %v569
    %v879 = vunpack.c.l.b16 %v570
    %v880 = vunpack.c.h.b16 %v570
    %v881 = vunpack.c.l.b16 %v571
    %v882 = vunpack.c.h.b16 %v571
    %v883 = vunpack.c.l.b16 %v572
    %v884 = vunpack.c.h.b16 %v572
    %v885 = vunpack.c.l.b16 %v573
    %v886 = vunpack.c.h.b16 %v573
    %v887 = vunpack.c.l.b16 %v574
    %v888 = vunpack.c.h.b16 %v574
    %v889 = vunpack.c.l.b16 %v575
    %v890 = vunpack.c.h.b16 %v575
    %v891 = vunpack.c.l.b16 %v576
    %v892 = vunpack.c.h.b16 %v576
    %v893 = vunpack.c.l.b16 %v577
    %v894 = vunpack.c.h.b16 %v577
    %v895 = vunpack.c.l.b16 %v578
    %v896 = vunpack.c.h.b16 %v578
    %v897 = vunpack.c.l.b16 %v579
    %v898 = vunpack.c.h.b16 %v579
    %v899 = vunpack.c.l.b16 %v580
    %v900 = vunpack.c.h.b16 %v580
    %v901 = vpack.c.b16 %v715, %v709
    %v902 = vpack.c.b16 %v716, %v710
    %v903 = vpack.c.b16 %v717, %v711
    %v904 = vpack.c.b16 %v718, %v712
    %v905 = vpack.c.b16 %v719, %v713
    %v906 = vpack.c.b16 %v720, %v714
    %v907 = vpack.c.b16 %v727, %v721
    %v908 = vpack.c.b16 %v728, %v722
    %v909 = vpack.c.b16 %v729, %v723
    %v910 = vpack.c.b16 %v730, %v724
    %v911 = vpack.c.b16 %v731, %v725
    %v912 = vpack.c.b16 %v732, %v726
    %v913 = vpack.c.b16 %v739, %v733
    %v914 = vpack.c.b16 %v740, %v734
    %v915 = vpack.c.b16 %v741, %v735
    %v916 = vpack.c.b16 %v742, %v736
    %v917 = vpack.c.b16 %v743, %v737
    %v918 = vpack.c.b16 %v744, %v738
    %v919 = vpack.c.b16 %v751, %v745
    %v920 = vpack.c.b16 %v752, %v746
    %v921 = vpack.c.b16 %v753, %v747
    %v922 = vpack.c.b16 %v754, %v748
    %v923 = vpack.c.b16 %v755, %v749
    %v924 = vpack.c.b16 %v756, %v750
    %v925 = vpack.c.b16 %v763, %v757
    %v926 = vpack.c.b16 %v764, %v758
    %v927 = vpack.c.b16 %v765, %v759
    %v928 = vpack.c.b16 %v766, %v760
    %v929 = vpack.c.b16 %v767, %v761
    %v930 = vpack.c.b16 %v768, %v762
    %v931 = vpack.c.b16 %v775, %v769
    %v932 = vpack.c.b16 %v776, %v770
    %v933 = vpack.c.b16 %v777, %v771
    %v934 = vpack.c.b16 %v778, %v772
    %v935 = vpack.c.b16 %v779, %v773
    %v936 = vpack.c.b16 %v780, %v774
    %v937 = vpack.c.b16 %v787, %v781
    %v938 = vpack.c.b16 %v788, %v782
    %v939 = vpack.c.b16 %v789, %v783
    %v940 = vpack.c.b16 %v790, %v784
    %v941 = vpack.c.b16 %v791, %v785
    %v942 = vpack.c.b16 %v792, %v786
    %v943 = vpack.c.b16 %v799, %v793
    %v944 = vpack.c.b16 %v800, %v794
    %v945 = vpack.c.b16 %v801, %v795
    %v946 = vpack.c.b16 %v802, %v796
    %v947 = vpack.c.b16 %v803, %v797
    %v948 = vpack.c.b16 %v804, %v798
    %v949 = vpack.c.b16 %v811, %v805
    %v950 = vpack.c.b16 %v812, %v806
    %v951 = vpack.c.b16 %v813, %v807
    %v952 = vpack.c.b16 %v814, %v808
    %v953 = vpack.c.b16 %v815, %v809
    %v954 = vpack.c.b16 %v816, %v810
    %v955 = vpack.c.b16 %v823, %v817
    %v956 = vpack.c.b16 %v824, %v818
    %v957 = vpack.c.b16 %v825, %v819
    %v958 = vpack.c.b16 %v826, %v820
    %v959 = vpack.c.b16 %v827, %v821
    %v960 = vpack.c.b16 %v828, %v822
    %v961 = vpack.c.b16 %v835, %v829
    %v962 = vpack.c.b16 %v836, %v830
    %v963 = vpack.c.b16 %v837, %v831
    %v964 = vpack.c.b16 %v838, %v832
    %v965 = vpack.c.b16 %v839, %v833
    %v966 = vpack.c.b16 %v840, %v834
    %v967 = vpack.c.b16 %v847, %v841
    %v968 = vpack.c.b16 %v848, %v842
    %v969 = vpack.c.b16 %v849, %v843
    %v970 = vpack.c.b16 %v850, %v844
    %v971 = vpack.c.b16 %v851, %v845
    %v972 = vpack.c.b16 %v852, %v846
    %v973 = vpack.c.b16 %v859, %v853
    %v974 = vpack.c.b16 %v860, %v854
    %v975 = vpack.c.b16 %v861, %v855
    %v976 = vpack.c.b16 %v862, %v856
    %v977 = vpack.c.b16 %v863, %v857
    %v978 = vpack.c.b16 %v864, %v858
    %v979 = vpack.c.b16 %v871, %v865
    %v980 = vpack.c.b16 %v872, %v866
    %v981 = vpack.c.b16 %v873, %v867
    %v982 = vpack.c.b16 %v874, %v868
    %v983 = vpack.c.b16 %v875, %v869
    %v984 = vpack.c.b16 %v876, %v870
    %v985 = vpack.c.b16 %v883, %v877
    %v986 = vpack.c.b16 %v884, %v878
    %v987 = vpack.c.b16 %v885, %v879
    %v988 = vpack.c.b16 %v886, %v880
    %v989 = vpack.c.b16 %v887, %v881
    %v990 = vpack.c.b16 %v888, %v882
    %v991 = vpack.c.b16 %v895, %v889
    %v992 = vpack.c.b16 %v896, %v890
    %v993 = vpack.c.b16 %v897, %v891
    %v994 = vpack.c.b16 %v898, %v892
    %v995 = vpack.c.b16 %v899, %v893
    %v996 = vpack.c.b16 %v900, %v894
    %1093 = vmatprep.subr.bf16.mxu0 %v944
    %1094 = vmatpush1.bf16.msra.mxu0 %v943
    %1095 = vmatprep.subr.bf16.mxu0 %v938
    %1096 = vmatpush1.bf16.msra.mxu0 %v937
    %1097 = vmatprep.subr.bf16.mxu0 %v932
    %1098 = vmatpush1.bf16.msra.mxu0 %v931
    %1099 = vmatprep.subr.bf16.mxu0 %v926
    %1100 = vmatpush1.bf16.msra.mxu0 %v925
    %1101 = vmatprep.subr.bf16.mxu0 %v920
    %1102 = vmatpush1.bf16.msra.mxu0 %v919
    %1103 = vmatprep.subr.bf16.mxu0 %v914
    %1104 = vmatpush1.bf16.msra.mxu0 %v913
    %1105 = vmatprep.subr.bf16.mxu0 %v908
    %1106 = vmatpush1.bf16.msra.mxu0 %v907
    %1107 = vmatprep.subr.bf16.mxu0 %v902
    %1108 = vmatpush1.bf16.msra.mxu0 %v901
    %1109 = vmatprep.subr.bf16.mxu0 %v992
    %1110 = vmatpush2.bf16.msra.mxu0 %v991
    %1111 = vmatprep.subr.bf16.mxu0 %v986
    %1112 = vmatpush2.bf16.msra.mxu0 %v985
    %1113 = vmatprep.subr.bf16.mxu0 %v980
    %1114 = vmatpush2.bf16.msra.mxu0 %v979
    %1115 = vmatprep.subr.bf16.mxu0 %v974
    %1116 = vmatpush2.bf16.msra.mxu0 %v973
    %1117 = vmatprep.subr.bf16.mxu0 %v968
    %1118 = vmatpush2.bf16.msra.mxu0 %v967
    %1119 = vmatprep.subr.bf16.mxu0 %v962
    %1120 = vmatpush2.bf16.msra.mxu0 %v961
    %1121 = vmatprep.subr.bf16.mxu0 %v956
    %1122 = vmatpush2.bf16.msra.mxu0 %v955
    %1123 = vmatprep.subr.bf16.mxu0 %v950
    %1124 = vmatpush2.bf16.msra.mxu0 %v949
    %1125 = vmatprep.mubr.bf16.mxu0 %v484
    %1126 = vmatmul.mubr.bf16.gmra.mxu0 %v483
    %v1127 = vpop.f32.mrf.mxu0
    %v1128 = vadd.f32 %v586, %v1127
    %v1129 = vpop.f32.mrf.mxu0
    %v1130 = vadd.f32 %v590, %v1129
    %v1131 = vpop.f32.mrf.mxu0
    %v1132 = vpop.f32.mrf.mxu0
    %1133 = vdwg.mxu0
    %1134 = vmatprep.subr.bf16.mxu0 %v946
    %1135 = vmatpush1.bf16.msra.mxu0 %v945
    %1136 = vmatprep.subr.bf16.mxu0 %v940
    %1137 = vmatpush1.bf16.msra.mxu0 %v939
    %1138 = vmatprep.subr.bf16.mxu0 %v934
    %1139 = vmatpush1.bf16.msra.mxu0 %v933
    %1140 = vmatprep.subr.bf16.mxu0 %v928
    %1141 = vmatpush1.bf16.msra.mxu0 %v927
    %1142 = vmatprep.subr.bf16.mxu0 %v922
    %1143 = vmatpush1.bf16.msra.mxu0 %v921
    %1144 = vmatprep.subr.bf16.mxu0 %v916
    %1145 = vmatpush1.bf16.msra.mxu0 %v915
    %1146 = vmatprep.subr.bf16.mxu0 %v910
    %1147 = vmatpush1.bf16.msra.mxu0 %v909
    %1148 = vmatprep.subr.bf16.mxu0 %v904
    %1149 = vmatpush1.bf16.msra.mxu0 %v903
    %1150 = vmatprep.subr.bf16.mxu0 %v994
    %1151 = vmatpush2.bf16.msra.mxu0 %v993
    %1152 = vmatprep.subr.bf16.mxu0 %v988
    %1153 = vmatpush2.bf16.msra.mxu0 %v987
    %1154 = vmatprep.subr.bf16.mxu0 %v982
    %1155 = vmatpush2.bf16.msra.mxu0 %v981
    %1156 = vmatprep.subr.bf16.mxu0 %v976
    %1157 = vmatpush2.bf16.msra.mxu0 %v975
    %1158 = vmatprep.subr.bf16.mxu0 %v970
    %1159 = vmatpush2.bf16.msra.mxu0 %v969
    %1160 = vmatprep.subr.bf16.mxu0 %v964
    %1161 = vmatpush2.bf16.msra.mxu0 %v963
    %1162 = vmatprep.subr.bf16.mxu0 %v958
    %1163 = vmatpush2.bf16.msra.mxu0 %v957
    %1164 = vmatprep.subr.bf16.mxu0 %v952
    %1165 = vmatpush2.bf16.msra.mxu0 %v951
    %1166 = vmatprep.mubr.bf16.mxu0 %v484
    %1167 = vmatmul.mubr.bf16.gmra.mxu0 %v483
    %v1168 = vpop.f32.mrf.mxu0
    %v1169 = vadd.f32 %v594, %v1168
    %v1170 = vpop.f32.mrf.mxu0
    %v1171 = vadd.f32 %v598, %v1170
    %v1172 = vpop.f32.mrf.mxu0
    %v1173 = vpop.f32.mrf.mxu0
    %1174 = vdwg.mxu0
    %1175 = vmatprep.subr.bf16.mxu0 %v948
    %1176 = vmatpush1.bf16.msra.mxu0 %v947
    %1177 = vmatprep.subr.bf16.mxu0 %v942
    %1178 = vmatpush1.bf16.msra.mxu0 %v941
    %1179 = vmatprep.subr.bf16.mxu0 %v936
    %1180 = vmatpush1.bf16.msra.mxu0 %v935
    %1181 = vmatprep.subr.bf16.mxu0 %v930
    %1182 = vmatpush1.bf16.msra.mxu0 %v929
    %1183 = vmatprep.subr.bf16.mxu0 %v924
    %1184 = vmatpush1.bf16.msra.mxu0 %v923
    %1185 = vmatprep.subr.bf16.mxu0 %v918
    %1186 = vmatpush1.bf16.msra.mxu0 %v917
    %1187 = vmatprep.subr.bf16.mxu0 %v912
    %1188 = vmatpush1.bf16.msra.mxu0 %v911
    %1189 = vmatprep.subr.bf16.mxu0 %v906
    %1190 = vmatpush1.bf16.msra.mxu0 %v905
    %1191 = vmatprep.subr.bf16.mxu0 %v996
    %1192 = vmatpush2.bf16.msra.mxu0 %v995
    %1193 = vmatprep.subr.bf16.mxu0 %v990
    %1194 = vmatpush2.bf16.msra.mxu0 %v989
    %1195 = vmatprep.subr.bf16.mxu0 %v984
    %1196 = vmatpush2.bf16.msra.mxu0 %v983
    %1197 = vmatprep.subr.bf16.mxu0 %v978
    %1198 = vmatpush2.bf16.msra.mxu0 %v977
    %1199 = vmatprep.subr.bf16.mxu0 %v972
    %1200 = vmatpush2.bf16.msra.mxu0 %v971
    %1201 = vmatprep.subr.bf16.mxu0 %v966
    %1202 = vmatpush2.bf16.msra.mxu0 %v965
    %1203 = vmatprep.subr.bf16.mxu0 %v960
    %1204 = vmatpush2.bf16.msra.mxu0 %v959
    %1205 = vmatprep.subr.bf16.mxu0 %v954
    %1206 = vmatpush2.bf16.msra.mxu0 %v953
    %1207 = vmatprep.mubr.bf16.mxu0 %v484
    %1208 = vmatmul.mubr.bf16.gmra.mxu0 %v483
    %v1209 = vpop.f32.mrf.mxu0
    %v1210 = vadd.f32 %v602, %v1209
    %v1211 = vpop.f32.mrf.mxu0
    %v1212 = vadd.f32 %v606, %v1211
    %v1213 = vpop.f32.mrf.mxu0
    %v1214 = vpop.f32.mrf.mxu0
    %1215 = vdwg.mxu0
    %v1222 = vcombine.low %v1128, %v1130
    %v1223 = vcombine.low %v1169, %v1171
    %v1225 = vunpack.c.l.s4 1983009808
    %v1226 = vunpack.c.0.s8 %v1225
    %v1227 = vlaneseq
    %v1228 = vshrl.u32 %v1227, 7
    %v1229 = vsub.s32 %v1226, %v1228
    %v1230 = vrot.slane %v1222, %v1229
    %v1232 = vunpack.c.l.s4 1983009808
    %v1233 = vunpack.c.0.s8 %v1232
    %v1234 = vlaneseq
    %v1235 = vshrl.u32 %v1234, 7
    %v1236 = vsub.s32 %v1233, %v1235
    %v1237 = vrot.slane %v1223, %v1236
    %v1238 = vcombine.low %v1230, %v1237
    %v1239 = vcombine.low %v1210, %v1212
    %v1241 = vunpack.c.l.s4 1983009808
    %v1242 = vunpack.c.0.s8 %v1241
    %v1243 = vlaneseq
    %v1244 = vshrl.u32 %v1243, 7
    %v1245 = vsub.s32 %v1242, %v1244
    %v1246 = vrot.slane %v1239, %v1245
    %1249 = vst [vmem:[#allocation13] sm:$0xff] %v1238
    %1250 = vst [vmem:[#allocation13 + $0x8] sm:$0xf] %v1246
    // Predicated region
    $region54: #{tpu_custom_call.1} parent=1 // pred_check
      _
    $region55: #{tpu_custom_call.1} parent=1 // pred_check_branch
      %1252 = sbr.rel (0) target = $region57
    $region56: #{tpu_custom_call.1} parent=1 // pred_region
      %s1254 = ssub.s32 192, 192
      %1255 = vsyncadd [#allocation4], %s1254
      %s1257 = sshll.u32 [#allocation13], 4
      %s1258 = int_to_ptr.vmem [resolvable:$true] %s1257
      %1260 = dma.vmem_to_hbm [thread:$0]  %s1258, 192, %s7, [#allocation4]
    $region57: #{tpu_custom_call.1} parent=1 // pred_fallthru
      _
    // Predicated region
    $region58: #{tpu_custom_call.1} parent=1 // pred_check
      _
    $region59: #{tpu_custom_call.1} parent=1 // pred_check_branch
      %1262 = sbr.rel (0) target = $region61
    $region60: #{tpu_custom_call.1} parent=1 // pred_region
      %1263 = dma.done [#allocation4], 192
    $region61: #{tpu_custom_call.1} parent=1 // pred_fallthru
      _
    %1264 = vsyncpa [#allocation3], 1
    %1265 = vsyncpa [#allocation6], 1
    %1266 = vsyncpa [#allocation9], 1
    %1267 = vsyncpa [#allocation12], 1
    %1268 = vsyncpa [#allocation4], 1

</llo_original>
